<compile_context>
chip_gen: v7x
topology: tpu7x:2x2x1
jax: 0.10.0
libtpu: 0.0.40
codegen_flags: <defaults>
</compile_context>

<pallas_src>
import math
import jax
import jax.numpy as jnp
from jax.experimental import pallas as pl
from jax.experimental.pallas import tpu as pltpu

_MiB = 1024 * 1024


# ---------------------------------------------------------------------------
# Kernels
# ---------------------------------------------------------------------------

def _ea_fused_kernel(x_ref, w0_ref, b0_ref, wf_ref, bnb_ref, o_ref):
    """Single-phase path: the whole (C, N) slab of one batch element is resident."""
    x = x_ref[0].astype(w0_ref.dtype)                       # bf16 cast in-kernel
    logits = jnp.dot(w0_ref[...], x,
                     preferred_element_type=jnp.float32) + b0_ref[...]
    # softmax over the spatial axis N (f32 math, EUP reciprocal)
    m = jnp.max(logits, axis=-1, keepdims=True)
    e = jnp.exp(logits - m)
    attn = e * pl.reciprocal(jnp.sum(e, axis=-1, keepdims=True), approx=True)
    # attn / (1e-9 + attn.sum(dim=1)) -> normalize over K (exact divide)
    attn = attn / (1e-9 + jnp.sum(attn, axis=0, keepdims=True))
    # fused linear_1 -> conv2 -> BN(eval)
    out = jnp.dot(wf_ref[...], attn.astype(wf_ref.dtype),
                  preferred_element_type=jnp.float32) + bnb_ref[...]
    o_ref[0] = out.astype(o_ref.dtype)


def _ea_tiled_kernel(x_ref, w0_ref, b0_ref, wf_ref, bnb_ref, o_ref,
                     logits_ref, m_ref, linv_ref):
    """Two-pass path for large N.  grid = (B, phase, N // TN).

    phase 0: stream x tiles, write (K, TN) logits into the (K, N) scratch.
    phase 1 (j == 0): compute softmax stats once from the resident logits.
    phase 1: softmax(N) -> K-normalize -> fused linear_1/conv2/BN -> out tile.
    """
    p = pl.program_id(1)
    j = pl.program_id(2)
    tn = x_ref.shape[-1]
    col = pl.multiple_of(j * tn, tn)

    @pl.when(p == 0)
    def _pass0():
        logits_ref[:, pl.ds(col, tn)] = (
            jnp.dot(w0_ref[...], x_ref[0].astype(w0_ref.dtype),
                    preferred_element_type=jnp.float32) + b0_ref[...])

    @pl.when(p == 1)
    def _pass1():
        @pl.when(j == 0)
        def _stats():
            # Single reduce over the VMEM-resident (K, N) logits replaces the
            # per-tile online-softmax bookkeeping of the previous version.
            lg = logits_ref[...]
            m = jnp.max(lg, axis=-1, keepdims=True)
            l = jnp.sum(jnp.exp(lg - m), axis=-1, keepdims=True)
            m_ref[...] = m
            linv_ref[...] = pl.reciprocal(l, approx=True)

        logits = logits_ref[:, pl.ds(col, tn)]
        attn = jnp.exp(logits - m_ref[...]) * linv_ref[...]
        attn = attn / (1e-9 + jnp.sum(attn, axis=0, keepdims=True))
        out = jnp.dot(wf_ref[...], attn.astype(wf_ref.dtype),
                      preferred_element_type=jnp.float32) + bnb_ref[...]
        o_ref[0] = out.astype(o_ref.dtype)


# ---------------------------------------------------------------------------
# Wrapper
# ---------------------------------------------------------------------------

def _fold_params(params, c):
    """Exact offline folding (f32); MXU operands cast to bf16."""
    w1, b1, w0, wl1, w2, gamma, beta, rmean, rvar = params
    eps = 1e-5
    bn_scale = gamma / jnp.sqrt(rvar + eps)                  # (C,)
    bn_bias = (beta - rmean * bn_scale).reshape(c, 1)        # (C, 1)
    w0p = jnp.dot(w0, w1)                                    # (K, C): linear_0 o conv1
    b0p = jnp.dot(w0, b1).reshape(-1, 1)                     # (K, 1)
    wf = bn_scale[:, None] * jnp.dot(w2, wl1)                # (C, K): BN o conv2 o linear_1
    return (w0p.astype(jnp.bfloat16), b0p.astype(jnp.float32),
            wf.astype(jnp.bfloat16), bn_bias.astype(jnp.float32))


def _pick_tile(n, need_fn, budget):
    """Largest 128-multiple tile dividing n that fits the VMEM budget."""
    divisors = [t for t in (4096, 2048, 1024, 512, 256, 128) if n % t == 0]
    for t in divisors:
        if need_fn(t, True) <= budget:
            return t
    if divisors:
        return divisors[-1]
    return n  # full-extent fallback (legal even when N % 128 != 0)


def external_attention(x_nchw, params, *, tn=None, out_dtype=None,
                       vmem_budget_bytes=32 * _MiB, force_tiled=False):
    """x_nchw: (B, C, H, W) -> (B, C, H, W).  Eval-mode External_attention.

    out_dtype=jnp.bfloat16 halves the output HBM stream on this mem-bound op.
    """
    B, C, H, W = x_nchw.shape
    N = H * W
    if out_dtype is None:
        out_dtype = x_nchw.dtype

    # x keeps the caller's dtype: the bf16 cast happens in-kernel on the tile
    # load, so there is no extra wrapper-side HBM pass over x.
    x = x_nchw.reshape(B, C, N)
    w0p, b0p, wf, bnb = _fold_params(params, C)
    K = w0p.shape[0]

    bx = x.dtype.itemsize
    bo = jnp.dtype(out_dtype).itemsize
    w_bytes = 2 * (K * C * 2 + K * 4 + C * K * 2 + C * 4)    # double-buffered weights

    def _need(tile_n, with_logits_scratch):
        need = 2 * C * tile_n * bx + 2 * C * tile_n * bo + w_bytes   # x / out double buffers
        if with_logits_scratch:
            need += K * N * 4 + 2 * K * 4                             # (K, N) logits + stats
        need += (3 * K * tile_n + C * tile_n) * 4                     # in-kernel f32 temporaries
        return need

    full = lambda r, c_: pl.BlockSpec((r, c_), lambda *_: (0, 0))

    use_fast = (tn is None) and (not force_tiled) and _need(N, False) <= vmem_budget_bytes

    if use_fast:
        vmem_limit = int(min(_need(N, False) + 24 * _MiB, 56 * _MiB))
        out = pl.pallas_call(
            _ea_fused_kernel,
            out_shape=jax.ShapeDtypeStruct((B, C, N), out_dtype),
            grid=(B,),
            in_specs=[
                pl.BlockSpec((1, C, N), lambda b: (b, 0, 0)),  # per-batch x slab
                full(K, C),    # folded linear_0 o conv1 weight (bf16)
                full(K, 1),    # folded bias (f32)
                full(C, K),    # folded BN o conv2 o linear_1 weight (bf16)
                full(C, 1),    # folded BN bias (f32)
            ],
            out_specs=pl.BlockSpec((1, C, N), lambda b: (b, 0, 0)),
            compiler_params=pltpu.CompilerParams(
                dimension_semantics=("parallel",),
                vmem_limit_bytes=vmem_limit,
            ),
        )(x, w0p, b0p, wf, bnb)
        return out.reshape(B, C, H, W)

    # ---- two-pass tiled path (large N) ----
    if tn is None:
        tn = _pick_tile(N, _need, vmem_budget_bytes)
    assert N % tn == 0, (N, tn)
    nt = N // tn

    # Phase 1 does not consume x: pin its block to the last tile (no extra DMA).
    x_map = lambda b, p, j: (b, 0, jnp.where(p == 0, j, nt - 1))
    # Output tiles are produced only in phase 1; park the block on tile 0 during
    # phase 0 (it is fully written at (p=1, j=0) before its first writeback).
    o_map = lambda b, p, j: (b, 0, jnp.where(p == 0, 0, j))

    vmem_limit = int(min(_need(tn, True) + 24 * _MiB, 56 * _MiB))

    out = pl.pallas_call(
        _ea_tiled_kernel,
        out_shape=jax.ShapeDtypeStruct((B, C, N), out_dtype),
        grid=(B, 2, nt),
        in_specs=[
            pl.BlockSpec((1, C, tn), x_map),   # streamed x spatial tile (caller dtype)
            full(K, C),
            full(K, 1),
            full(C, K),
            full(C, 1),
        ],
        out_specs=pl.BlockSpec((1, C, tn), o_map),
        scratch_shapes=[
            pltpu.VMEM((K, N), jnp.float32),   # persistent logits across spatial tiles
            pltpu.VMEM((K, 1), jnp.float32),   # softmax max (computed once per batch)
            pltpu.VMEM((K, 1), jnp.float32),   # 1 / sum-of-exp (computed once per batch)
        ],
        compiler_params=pltpu.CompilerParams(
            dimension_semantics=("parallel", "arbitrary", "arbitrary"),
            vmem_limit_bytes=vmem_limit,
        ),
    )(x, w0p, b0p, wf, bnb)
    return out.reshape(B, C, H, W)


# ---------------------------------------------------------------------------
# Init + reference
# ---------------------------------------------------------------------------

def init_params(key, c, k=32):
    """Deterministic init mirroring the PyTorch __init__ (eval-mode BN stats)."""
    k1, k2, k3, k4, k5 = jax.random.split(key, 5)
    std2d = math.sqrt(2.0 / c)                               # Conv2d: sqrt(2/(kh*kw*out))
    w1 = jax.random.normal(k1, (c, c), jnp.float32) * std2d  # conv1 weight
    b1 = jax.random.uniform(k5, (c,), jnp.float32,           # conv1 bias (torch default)
                            minval=-1.0 / math.sqrt(c), maxval=1.0 / math.sqrt(c))
    w0 = jax.random.normal(k2, (k, c), jnp.float32) * math.sqrt(2.0 / k)   # linear_0
    wl1 = jax.random.normal(k3, (c, k), jnp.float32) * math.sqrt(2.0 / c)  # linear_1 (re-init)
    w2 = jax.random.normal(k4, (c, c), jnp.float32) * std2d  # conv2[0] weight (no bias)
    gamma = jnp.ones((c,), jnp.float32)                      # BN weight = 1
    beta = jnp.zeros((c,), jnp.float32)                      # BN bias = 0
    rmean = jnp.zeros((c,), jnp.float32)                     # running stats (eval)
    rvar = jnp.ones((c,), jnp.float32)
    return (w1, b1, w0, wl1, w2, gamma, beta, rmean, rvar)


def external_attention_ref(x_nchw, params):
    """Pure-JAX f32 reference reproducing the PyTorch forward exactly (eval BN)."""
    B, C, H, W = x_nchw.shape
    w1, b1, w0, wl1, w2, gamma, beta, rmean, rvar = params
    x = x_nchw.reshape(B, C, H * W)
    x = jnp.einsum('oc,bcn->bon', w1, x) + b1[None, :, None]          # conv1
    attn = jnp.einsum('kc,bcn->bkn', w0, x)                           # linear_0
    attn = jax.nn.softmax(attn, axis=-1)
    attn = attn / (1e-9 + attn.sum(axis=1, keepdims=True))
    x = jnp.einsum('ck,bkn->bcn', wl1, attn)                          # linear_1
    x = jnp.einsum('oc,bcn->bon', w2, x)                              # conv2 conv
    eps = 1e-5
    x = (x - rmean[None, :, None]) / jnp.sqrt(rvar[None, :, None] + eps)
    x = x * gamma[None, :, None] + beta[None, :, None]                # BN (eval)
    return x.reshape(B, C, H, W)


if __name__ == "__main__":
    key = jax.random.PRNGKey(0)
    kx, kp = jax.random.split(key)

    B, C, H, W = 2, 64, 16, 16     # small demo shapes; real EANet uses C=512, larger H*W
    x = jax.random.normal(kx, (B, C, H, W), jnp.float32)
    params = init_params(kp, C, k=32)
    ref = external_attention_ref(x, params)

    def _check(out, tag, check_abs=True):
        out = jax.block_until_ready(out)
        assert out.shape == (B, C, H, W), (tag, out.shape)
        d = out.astype(jnp.float32) - ref
        max_abs = float(jnp.max(jnp.abs(d)))
        rel_l2 = float(jnp.linalg.norm(d) / jnp.linalg.norm(ref))
        # bf16 matmul operands -> tolerance re-baselined vs the f32 reference.
        if check_abs:
            assert max_abs < 5e-2, (tag, "max abs err", max_abs)
        assert rel_l2 < 5e-2, (tag, "rel l2 err", rel_l2)

    # 1) Single-phase fused path (whole per-batch slab resident in VMEM).
    _check(external_attention(x, params), "fast")
    # 2) Two-pass tiled path with tn=128 -> nt=2: exercises the (K, N) logits
    #    scratch, the once-per-batch softmax stats, and the output-block
    #    parking trick with B > 1 (regression for the index_map trick).
    _check(external_attention(x, params, force_tiled=True, tn=128), "tiled")
    # 3) bf16 output store (halves the largest HBM stream on this mem-bound op).
    _check(external_attention(x, params, out_dtype=jnp.bfloat16),
           "fast_bf16", check_abs=False)

    print("KERNEL_OK")
</pallas_src>

<mosaic_0001>
module attributes {stable_mosaic.version = 11 : i64} {
  func.func @_ea_fused_kernel(%arg0: i32, %arg1: memref<1x64x256xf32, #tpu.memory_space<vmem>>, %arg2: memref<32x64xbf16, #tpu.memory_space<vmem>>, %arg3: memref<32x1xf32, #tpu.memory_space<vmem>>, %arg4: memref<64x32xbf16, #tpu.memory_space<vmem>>, %arg5: memref<64x1xf32, #tpu.memory_space<vmem>>, %arg6: memref<1x64x256xf32, #tpu.memory_space<vmem>>) attributes {dimension_semantics = [#tpu.dimension_semantics<parallel>], iteration_bounds = array<i64: 2>, scalar_prefetch = 0 : i64, scratch_operands = 0 : i64, tpu.core_type = #tpu.core_type<tc>, window_params = [{transform_indices = @transform_0, window_bounds = array<i64: 1, 64, 256>}, {pipeline_mode = #tpu.pipeline_mode<synchronous>, transform_indices = @transform_1, window_bounds = array<i64: 32, 64>}, {pipeline_mode = #tpu.pipeline_mode<synchronous>, transform_indices = @transform_2, window_bounds = array<i64: 32, 1>}, {pipeline_mode = #tpu.pipeline_mode<synchronous>, transform_indices = @transform_3, window_bounds = array<i64: 64, 32>}, {pipeline_mode = #tpu.pipeline_mode<synchronous>, transform_indices = @transform_4, window_bounds = array<i64: 64, 1>}, {transform_indices = @transform_5, window_bounds = array<i64: 1, 64, 256>}]} {
    %c0 = arith.constant 0 : index
    %c0_0 = arith.constant 0 : index
    %c0_1 = arith.constant 0 : index
    %0 = vector.load %arg1[%c0, %c0_0, %c0_1] : memref<1x64x256xf32, #tpu.memory_space<vmem>>, vector<1x64x256xf32>
    %1 = vector.shape_cast %0 : vector<1x64x256xf32> to vector<64x256xf32>
    %2 = arith.truncf %1 : vector<64x256xf32> to vector<64x256xbf16>
    %c0_2 = arith.constant 0 : index
    %c0_3 = arith.constant 0 : index
    %3 = vector.load %arg2[%c0_2, %c0_3] : memref<32x64xbf16, #tpu.memory_space<vmem>>, vector<32x64xbf16>
    %cst = arith.constant dense<0.000000e+00> : vector<32x256xf32>
    %4 = tpu.matmul %3, %2, %cst {dimension_numbers = #tpu.dot_dimension_numbers<[1], [0], [0], [1], [0, 0, 1, 1], [], []>} : vector<32x64xbf16>, vector<64x256xbf16>, vector<32x256xf32> -> vector<32x256xf32>
    %c0_4 = arith.constant 0 : index
    %c0_5 = arith.constant 0 : index
    %5 = vector.load %arg3[%c0_4, %c0_5] : memref<32x1xf32, #tpu.memory_space<vmem>>, vector<32x1xf32>
    %6 = vector.broadcast %5 : vector<32x1xf32> to vector<32x256xf32>
    %7 = arith.addf %4, %6 : vector<32x256xf32>
    %cst_6 = arith.constant dense<0xFF800000> : vector<32xf32>
    %8 = vector.multi_reduction <maximumf>, %7, %cst_6 [1] : vector<32x256xf32> to vector<32xf32>
    %9 = vector.shape_cast %8 : vector<32xf32> to vector<32x1xf32>
    %10 = vector.broadcast %9 : vector<32x1xf32> to vector<32x256xf32>
    %11 = arith.subf %7, %10 : vector<32x256xf32>
    %12 = math.exp %11 : vector<32x256xf32>
    %cst_7 = arith.constant dense<0.000000e+00> : vector<32xf32>
    %13 = vector.multi_reduction <add>, %12, %cst_7 [1] : vector<32x256xf32> to vector<32xf32>
    %14 = vector.shape_cast %13 : vector<32xf32> to vector<32x1xf32>
    %15 = tpu.reciprocal %14 {approx = true} : vector<32x1xf32> -> vector<32x1xf32>
    %16 = vector.broadcast %15 : vector<32x1xf32> to vector<32x256xf32>
    %17 = arith.mulf %12, %16 : vector<32x256xf32>
    %cst_8 = arith.constant dense<0.000000e+00> : vector<256xf32>
    %18 = vector.multi_reduction <add>, %17, %cst_8 [0] : vector<32x256xf32> to vector<256xf32>
    %19 = vector.shape_cast %18 : vector<256xf32> to vector<1x256xf32>
    %cst_9 = arith.constant 9.99999971E-10 : f32
    %20 = vector.broadcast %cst_9 : f32 to vector<1x256xf32>
    %21 = arith.addf %20, %19 : vector<1x256xf32>
    %22 = vector.broadcast %21 : vector<1x256xf32> to vector<32x256xf32>
    %23 = arith.divf %17, %22 : vector<32x256xf32>
    %c0_10 = arith.constant 0 : index
    %c0_11 = arith.constant 0 : index
    %24 = vector.load %arg4[%c0_10, %c0_11] : memref<64x32xbf16, #tpu.memory_space<vmem>>, vector<64x32xbf16>
    %25 = arith.truncf %23 : vector<32x256xf32> to vector<32x256xbf16>
    %cst_12 = arith.constant dense<0.000000e+00> : vector<64x256xf32>
    %26 = tpu.matmul %24, %25, %cst_12 {dimension_numbers = #tpu.dot_dimension_numbers<[1], [0], [0], [1], [0, 0, 1, 1], [], []>} : vector<64x32xbf16>, vector<32x256xbf16>, vector<64x256xf32> -> vector<64x256xf32>
    %c0_13 = arith.constant 0 : index
    %c0_14 = arith.constant 0 : index
    %27 = vector.load %arg5[%c0_13, %c0_14] : memref<64x1xf32, #tpu.memory_space<vmem>>, vector<64x1xf32>
    %28 = vector.broadcast %27 : vector<64x1xf32> to vector<64x256xf32>
    %29 = arith.addf %26, %28 : vector<64x256xf32>
    %c0_15 = arith.constant 0 : index
    %c0_16 = arith.constant 0 : index
    %c0_17 = arith.constant 0 : index
    %30 = vector.load %arg6[%c0_15, %c0_16, %c0_17] : memref<1x64x256xf32, #tpu.memory_space<vmem>>, vector<1x64x256xf32>
    %31 = vector.shape_cast %30 : vector<1x64x256xf32> to vector<64x256xf32>
    %32 = vector.shape_cast %29 : vector<64x256xf32> to vector<1x64x256xf32>
    tpu.vector_store %arg6[%c0_15, %c0_16, %c0_17], %32 {strides = array<i32>} : memref<1x64x256xf32, #tpu.memory_space<vmem>>, vector<1x64x256xf32>,
    return
  }
  func.func @transform_0(%arg0: i32) -> (i32, i32, i32) {
    %c0_i32 = arith.constant 0 : i32
    %c0_i32_0 = arith.constant 0 : i32
    %c0_i32_1 = arith.constant 0 : i32
    return %arg0, %c0_i32, %c0_i32_0 : i32, i32, i32
  }
  func.func @transform_1(%arg0: i32) -> (i32, i32) {
    %c0_i32 = arith.constant 0 : i32
    %c0_i32_0 = arith.constant 0 : i32
    %c0_i32_1 = arith.constant 0 : i32
    return %c0_i32, %c0_i32_0 : i32, i32
  }
  func.func @transform_2(%arg0: i32) -> (i32, i32) {
    %c0_i32 = arith.constant 0 : i32
    %c0_i32_0 = arith.constant 0 : i32
    %c0_i32_1 = arith.constant 0 : i32
    return %c0_i32, %c0_i32_0 : i32, i32
  }
  func.func @transform_3(%arg0: i32) -> (i32, i32) {
    %c0_i32 = arith.constant 0 : i32
    %c0_i32_0 = arith.constant 0 : i32
    %c0_i32_1 = arith.constant 0 : i32
    return %c0_i32, %c0_i32_0 : i32, i32
  }
  func.func @transform_4(%arg0: i32) -> (i32, i32) {
    %c0_i32 = arith.constant 0 : i32
    %c0_i32_0 = arith.constant 0 : i32
    %c0_i32_1 = arith.constant 0 : i32
    return %c0_i32, %c0_i32_0 : i32, i32
  }
  func.func @transform_5(%arg0: i32) -> (i32, i32, i32) {
    %c0_i32 = arith.constant 0 : i32
    %c0_i32_0 = arith.constant 0 : i32
    %c0_i32_1 = arith.constant 0 : i32
    return %arg0, %c0_i32, %c0_i32_0 : i32, i32, i32
  }
}

</mosaic_0001>

<llo_original>
// kernel: tpu_custom_call.1
$region0: #{tpu_custom_call.1}
  #allocation0 [shape = 'u32[]', space=smem, size = 0x4, offset = 0x4, fixed_abs, tag = 'smem constant byte address 0x4 - core index']
  #allocation1 [shape = 'u32[144,128]{1,0:T(1,128)}', space=vmem, size = 0x12000, scoped, tag = 'internal scratch']
  %s0 = inlined_call_operand.hbm [shape: f32[2,64,256], index: 0, kind: input, shape index: {}]
  %s1 = inlined_call_operand.vmem [shape: bf16[32,64], index: 1, kind: input, shape index: {}]
  %s2 = inlined_call_operand.vmem [shape: f32[32,1], index: 2, kind: input, shape index: {}]
  %s3 = inlined_call_operand.vmem [shape: bf16[64,32], index: 3, kind: input, shape index: {}]
  %s4 = inlined_call_operand.vmem [shape: f32[64,1], index: 4, kind: input, shape index: {}]
  %s5 = inlined_call_operand.hbm [shape: f32[2,64,256], index: 5, kind: output, shape index: {}]
  %s6 = sld [smem:[#allocation0]]
  $region57: #{tpu_custom_call.1} parent=0
    _
  %s8 = ssub.s32 1, %s6
  %s9 = scalar_select 0, %s8, %s6
  $region1: #{tpu_custom_call.1} parent=0
    #allocation2 [shape = 'u8[131072]{0}', space=vmem, size = 0x20000, scoped, tag = 'input window, operand 0']
    #allocation3 [shape = 's32[2]{0}', space=sflag, size = 0x8, scoped, tag = 'scoped memory for tpu_custom_call.1']
    #allocation4 [shape = 's32[2]{0}', space=sflag, size = 0x8, scoped, tag = 'scoped memory for tpu_custom_call.1']
    #allocation5 [shape = 'u8[131072]{0}', space=vmem, size = 0x20000, scoped, tag = 'output window, operand 0']
    %10 = vsyncpa [#allocation3], 0
    %s11 = scalar_lea.sflag [#allocation3], 1
    %12 = vsyncpa %s11, 0
    %13 = vsyncpa [#allocation4], 0
    %s14 = scalar_lea.sflag [#allocation4], 1
    %15 = vsyncpa %s14, 0
    loop: start=0, step=1, limit=4
    $region2: #{tpu_custom_call.1} parent=1 // loop_pre_header
      _
    $region3: #{tpu_custom_call.1} parent=1 // loop_header
      %s17 = sphi 0, %s21
      %p18 = scmp.ge.s32.totalorder %s17, 4
      %s27 = sphi 0, %s29
      %s30 = sphi 0, %s27
      %s31 = sphi 0, %s30
      %s47 = sphi 0, %s31
      %s51 = sphi 0, %s51
      %s53 = sphi 0, %s51
      %s54 = sphi 0, %s53
      %s68 = sphi 0, %s54
      %s72 = sphi 0, %s72
      %s74 = sphi 0, %s72
      %s75 = sphi 0, %s74
      %s89 = sphi 0, %s75
      %s93 = sphi 0, %s93
      %s95 = sphi 0, %s93
      %s96 = sphi 0, %s95
      %s110 = sphi 0, %s96
      %s114 = sphi 0, %s114
      %s116 = sphi 0, %s114
      %s117 = sphi 0, %s116
      %s131 = sphi 0, %s117
      %s137 = sphi 0, %s139
      %s140 = sphi 0, %s137
      %s141 = sphi 0, %s140
      %s157 = sphi 0, %s141
    $region4: #{tpu_custom_call.1} parent=1 // loop_header_branch
      %20 = sbr.rel (%p18) target = $region8
    $region5: #{tpu_custom_call.1} parent=1 // loop_body
      %s22 = ssub.s32 %s17, 1
      %s23 = ssub.s32 %s17, 2
      %s24 = sadd.s32 %s17, 1
      %s25 = ssub.s32 %s17, %s24
      %p26 = scmp.eq.s32.totalorder %s25, 0
      %s28 = sadd.s32 %s27, 1
      %s29 = scalar_select %p26, %s27, %s28
      %p32 = pneg %p26
      %p33 = scmp.eq.s32.totalorder %s17, 1
      %p34 = por %p32, %p33
      %p35 = scmp.ne.s32.totalorder %s27, %s30
      %p36 = scmp.eq.s32.totalorder %s17, 0
      %p37 = por %p35, %p36
      %p38 = scmp.ne.s32.totalorder %s27, %s30
      %p39 = scmp.eq.s32.totalorder %s22, 1
      %p40 = por %p38, %p39
      %p41 = scmp.ne.s32.totalorder %s30, %s31
      %p42 = scmp.eq.s32.totalorder %s22, 0
      %p43 = por %p41, %p42
      %p44 = scmp.ne.s32.totalorder %s30, %s31
      %p45 = scmp.eq.s32.totalorder %s23, 1
      %p46 = por %p44, %p45
      %p48 = scmp.ne.s32.totalorder %s31, %s47
      %p49 = scmp.eq.s32.totalorder %s23, 0
      %p50 = por %p48, %p49
      %s52 = sadd.s32 %s51, 1
      %p55 = scmp.eq.s32.totalorder %s17, 1
      %p56 = scmp.ne.s32.totalorder %s51, %s53
      %p57 = scmp.eq.s32.totalorder %s17, 0
      %p58 = por %p56, %p57
      %p59 = scmp.ne.s32.totalorder %s51, %s53
      %p60 = scmp.eq.s32.totalorder %s22, 1
      %p61 = por %p59, %p60
      %p62 = scmp.ne.s32.totalorder %s53, %s54
      %p63 = scmp.eq.s32.totalorder %s22, 0
      %p64 = por %p62, %p63
      %p65 = scmp.ne.s32.totalorder %s53, %s54
      %p66 = scmp.eq.s32.totalorder %s23, 1
      %p67 = por %p65, %p66
      %p69 = scmp.ne.s32.totalorder %s54, %s68
      %p70 = scmp.eq.s32.totalorder %s23, 0
      %p71 = por %p69, %p70
      %s73 = sadd.s32 %s72, 1
      %p76 = scmp.eq.s32.totalorder %s17, 1
      %p77 = scmp.ne.s32.totalorder %s72, %s74
      %p78 = scmp.eq.s32.totalorder %s17, 0
      %p79 = por %p77, %p78
      %p80 = scmp.ne.s32.totalorder %s72, %s74
      %p81 = scmp.eq.s32.totalorder %s22, 1
      %p82 = por %p80, %p81
      %p83 = scmp.ne.s32.totalorder %s74, %s75
      %p84 = scmp.eq.s32.totalorder %s22, 0
      %p85 = por %p83, %p84
      %p86 = scmp.ne.s32.totalorder %s74, %s75
      %p87 = scmp.eq.s32.totalorder %s23, 1
      %p88 = por %p86, %p87
      %p90 = scmp.ne.s32.totalorder %s75, %s89
      %p91 = scmp.eq.s32.totalorder %s23, 0
      %p92 = por %p90, %p91
      %s94 = sadd.s32 %s93, 1
      %p97 = scmp.eq.s32.totalorder %s17, 1
      %p98 = scmp.ne.s32.totalorder %s93, %s95
      %p99 = scmp.eq.s32.totalorder %s17, 0
      %p100 = por %p98, %p99
      %p101 = scmp.ne.s32.totalorder %s93, %s95
      %p102 = scmp.eq.s32.totalorder %s22, 1
      %p103 = por %p101, %p102
      %p104 = scmp.ne.s32.totalorder %s95, %s96
      %p105 = scmp.eq.s32.totalorder %s22, 0
      %p106 = por %p104, %p105
      %p107 = scmp.ne.s32.totalorder %s95, %s96
      %p108 = scmp.eq.s32.totalorder %s23, 1
      %p109 = por %p107, %p108
      %p111 = scmp.ne.s32.totalorder %s96, %s110
      %p112 = scmp.eq.s32.totalorder %s23, 0
      %p113 = por %p111, %p112
      %s115 = sadd.s32 %s114, 1
      %p118 = scmp.eq.s32.totalorder %s17, 1
      %p119 = scmp.ne.s32.totalorder %s114, %s116
      %p120 = scmp.eq.s32.totalorder %s17, 0
      %p121 = por %p119, %p120
      %p122 = scmp.ne.s32.totalorder %s114, %s116
      %p123 = scmp.eq.s32.totalorder %s22, 1
      %p124 = por %p122, %p123
      %p125 = scmp.ne.s32.totalorder %s116, %s117
      %p126 = scmp.eq.s32.totalorder %s22, 0
      %p127 = por %p125, %p126
      %p128 = scmp.ne.s32.totalorder %s116, %s117
      %p129 = scmp.eq.s32.totalorder %s23, 1
      %p130 = por %p128, %p129
      %p132 = scmp.ne.s32.totalorder %s117, %s131
      %p133 = scmp.eq.s32.totalorder %s23, 0
      %p134 = por %p132, %p133
      %s135 = ssub.s32 %s17, %s24
      %p136 = scmp.eq.s32.totalorder %s135, 0
      %s138 = sadd.s32 %s137, 1
      %s139 = scalar_select %p136, %s137, %s138
      %p142 = pneg %p136
      %p143 = scmp.eq.s32.totalorder %s17, 1
      %p144 = por %p142, %p143
      %p145 = scmp.ne.s32.totalorder %s137, %s140
      %p146 = scmp.eq.s32.totalorder %s17, 0
      %p147 = por %p145, %p146
      %p148 = scmp.ne.s32.totalorder %s137, %s140
      %p149 = scmp.eq.s32.totalorder %s22, 1
      %p150 = por %p148, %p149
      %p151 = scmp.ne.s32.totalorder %s140, %s141
      %p152 = scmp.eq.s32.totalorder %s22, 0
      %p153 = por %p151, %p152
      %p154 = scmp.ne.s32.totalorder %s140, %s141
      %p155 = scmp.eq.s32.totalorder %s23, 1
      %p156 = por %p154, %p155
      %p158 = scmp.ne.s32.totalorder %s141, %s157
      %p159 = scmp.eq.s32.totalorder %s23, 0
      %p160 = por %p158, %p159
      %p161 = scmp.le.s32.totalorder 1, %s17
      %p162 = scmp.lt.s32.totalorder %s17, 3
      %p163 = pnand %p161, %p162
      %p164 = pneg %p163
      // Predicated region
      $region9: #{tpu_custom_call.1} parent=5 // pred_check
        _
      $region10: #{tpu_custom_call.1} parent=5 // pred_check_branch
        %166 = sbr.rel (%p163) target = $region12
      $region11: #{tpu_custom_call.1} parent=5 // pred_region
        %s167 = ssub.s32 %s17, 1
        // Predicated region
        $region13: #{tpu_custom_call.1} parent=11 // pred_check
          %p168 = pneg %p64
        $region14: #{tpu_custom_call.1} parent=11 // pred_check_branch
          %170 = sbr.rel (%p168) target = $region16
        $region15: #{tpu_custom_call.1} parent=11 // pred_region
          _
        $region16: #{tpu_custom_call.1} parent=11 // pred_fallthru
          _
        // Predicated region
        $region17: #{tpu_custom_call.1} parent=11 // pred_check
          %p171 = pneg %p85
        $region18: #{tpu_custom_call.1} parent=11 // pred_check_branch
          %173 = sbr.rel (%p171) target = $region20
        $region19: #{tpu_custom_call.1} parent=11 // pred_region
          _
        $region20: #{tpu_custom_call.1} parent=11 // pred_fallthru
          _
        // Predicated region
        $region21: #{tpu_custom_call.1} parent=11 // pred_check
          %p174 = pneg %p106
        $region22: #{tpu_custom_call.1} parent=11 // pred_check_branch
          %176 = sbr.rel (%p174) target = $region24
        $region23: #{tpu_custom_call.1} parent=11 // pred_region
          _
        $region24: #{tpu_custom_call.1} parent=11 // pred_fallthru
          _
        // Predicated region
        $region25: #{tpu_custom_call.1} parent=11 // pred_check
          %p177 = pneg %p127
        $region26: #{tpu_custom_call.1} parent=11 // pred_check_branch
          %179 = sbr.rel (%p177) target = $region28
        $region27: #{tpu_custom_call.1} parent=11 // pred_region
          _
        $region28: #{tpu_custom_call.1} parent=11 // pred_fallthru
          _
      $region12: #{tpu_custom_call.1} parent=5 // pred_fallthru
        _
      %p180 = scmp.lt.s32.totalorder %s17, 2
      // Predicated region
      $region29: #{tpu_custom_call.1} parent=5 // pred_check
        %p181 = pneg %p180
      $region30: #{tpu_custom_call.1} parent=5 // pred_check_branch
        %183 = sbr.rel (%p181) target = $region32
      $region31: #{tpu_custom_call.1} parent=5 // pred_region
        // Predicated region
        $region33: #{tpu_custom_call.1} parent=31 // pred_check
          %p184 = pneg %p37
        $region34: #{tpu_custom_call.1} parent=31 // pred_check_branch
          %186 = sbr.rel (%p184) target = $region36
        $region35: #{tpu_custom_call.1} parent=31 // pred_region
          %s187 = sand.u32 %s27, 1
          %s188 = scalar_lea.sflag [#allocation3], %s187
          %s189 = sand.u32 %s27, 1
          %s190 = smul.addr %s189, 128
          %s191 = scalar_lea.vmem [#allocation2], %s190
          %s193 = ssub.s32 2048, 2048
          %194 = vsyncadd %s188, %s193
          %s195 = smul.addr %s17, 16
          %s196 = smul.addr %s195, 128
          %s197 = scalar_lea.hbm %s0, %s196
          %s198 = sshll.u32 %s191, 4
          %s199 = int_to_ptr.vmem [resolvable:$true] %s198
          %204 = dma.hbm_to_vmem [thread:$0]  %s197, 2048, %s199, %s188, 256, 256, 16
        $region36: #{tpu_custom_call.1} parent=31 // pred_fallthru
          _
      $region32: #{tpu_custom_call.1} parent=5 // pred_fallthru
        _
      %p205 = scmp.le.s32.totalorder 1, %s17
      %p206 = scmp.lt.s32.totalorder %s17, 3
      %p207 = pnand %p205, %p206
      %p208 = pneg %p207
      // Predicated region
      $region37: #{tpu_custom_call.1} parent=5 // pred_check
        _
      $region38: #{tpu_custom_call.1} parent=5 // pred_check_branch
        %210 = sbr.rel (%p207) target = $region40
      $region39: #{tpu_custom_call.1} parent=5 // pred_region
        %s211 = ssub.s32 %s17, 1
        %s212 = sand.u32 %s30, 1
        %s213 = scalar_lea.sflag [#allocation3], %s212
        %s214 = sand.u32 %s30, 1
        %s215 = smul.addr %s214, 128
        %s216 = scalar_lea.vmem [#allocation2], %s215
        // Predicated region
        $region41: #{tpu_custom_call.1} parent=39 // pred_check
          %p217 = pneg %p43
        $region42: #{tpu_custom_call.1} parent=39 // pred_check_branch
          %219 = sbr.rel (%p217) target = $region44
        $region43: #{tpu_custom_call.1} parent=39 // pred_region
          %220 = dma.done %s213, 2048
        $region44: #{tpu_custom_call.1} parent=39 // pred_fallthru
          _
        %s221 = sand.u32 %s30, 1
        %s222 = scalar_lea.sflag [#allocation3], %s221
        %s223 = sand.u32 %s30, 1
        %s224 = smul.addr %s223, 128
        %s225 = scalar_lea.vmem [#allocation2], %s224
        %p226 = pneg %p43
        %p227 = pneg %p40
        %p228 = pneg %p64
        %p229 = pneg %p61
        %p230 = pneg %p85
        %p231 = pneg %p82
        %p232 = pneg %p106
        %p233 = pneg %p103
        %p234 = pneg %p127
        %p235 = pneg %p124
        %p236 = pneg %p153
        %p237 = pneg %p150
        %s238 = sand.u32 %s140, 1
        %s239 = scalar_lea.sflag [#allocation4], %s238
        %s240 = sand.u32 %s140, 1
        %s241 = smul.addr %s240, 128
        %s242 = scalar_lea.vmem [#allocation5], %s241
        %v244 = vld [vmem:[%s216] sm:$0xff]
        %v245 = vld [vmem:[%s216 + $0x8] sm:$0xff]
        %v246 = vld [vmem:[%s216 + $0x10] sm:$0xff]
        %v247 = vld [vmem:[%s216 + $0x18] sm:$0xff]
        %v248 = vld [vmem:[%s216 + $0x20] sm:$0xff]
        %v249 = vld [vmem:[%s216 + $0x28] sm:$0xff]
        %v250 = vld [vmem:[%s216 + $0x30] sm:$0xff]
        %v251 = vld [vmem:[%s216 + $0x38] sm:$0xff]
        %v252 = vld [vmem:[%s216 + $0x40] sm:$0xff]
        %v253 = vld [vmem:[%s216 + $0x48] sm:$0xff]
        %v254 = vld [vmem:[%s216 + $0x50] sm:$0xff]
        %v255 = vld [vmem:[%s216 + $0x58] sm:$0xff]
        %v256 = vld [vmem:[%s216 + $0x60] sm:$0xff]
        %v257 = vld [vmem:[%s216 + $0x68] sm:$0xff]
        %v258 = vld [vmem:[%s216 + $0x70] sm:$0xff]
        %v259 = vld [vmem:[%s216 + $0x78] sm:$0xff]
        %v260 = vpack.c.bf16 %v246, %v244
        %v261 = vpack.c.bf16 %v247, %v245
        %v262 = vpack.c.bf16 %v250, %v248
        %v263 = vpack.c.bf16 %v251, %v249
        %v264 = vpack.c.bf16 %v254, %v252
        %v265 = vpack.c.bf16 %v255, %v253
        %v266 = vpack.c.bf16 %v258, %v256
        %v267 = vpack.c.bf16 %v259, %v257
        %v268 = vld [vmem:[%s1] sm:$0xf]
        %v269 = vld [vmem:[%s1 + $0x4] sm:$0xf]
        %v270 = vld [vmem:[%s1 + $0x8] sm:$0xf]
        %v271 = vld [vmem:[%s1 + $0xc] sm:$0xf]
        %v272 = vld [vmem:[%s2] sm:$0xff]
        %v273 = vld [vmem:[%s2 + $0x8] sm:$0xff]
        %v274 = vld [vmem:[%s2 + $0x10] sm:$0xff]
        %v275 = vld [vmem:[%s2 + $0x18] sm:$0xff]
        %277 = vset.pattern.permute.xlu0 0
        %278 = vperm.xlu0 %277, %v272
        %v279 = vpop.permute.xlu0 %278
        %282 = vset.pattern.permute.xlu0 0
        %283 = vperm.xlu0 %282, %v273
        %v284 = vpop.permute.xlu0 %283
        %287 = vset.pattern.permute.xlu0 0
        %288 = vperm.xlu0 %287, %v274
        %v289 = vpop.permute.xlu0 %288
        %292 = vset.pattern.permute.xlu0 0
        %293 = vperm.xlu0 %292, %v275
        %v294 = vpop.permute.xlu0 %293
        %v300 = vunpack.c.l.b16 %v268
        %v301 = vunpack.c.l.b16 %v269
        %v302 = vunpack.c.l.b16 %v270
        %v303 = vunpack.c.l.b16 %v271
        %v304 = vpack.c.b16 %v301, %v300
        %v305 = vpack.c.b16 %v303, %v302
        %vm306 = vcmask 523264
        %v308 = vsel %vm306, %v304, 0
        %v311 = vsel %vm306, %v305, 0
        %313 = vmatprep.subr.bf16.mxu0 %v261
        %314 = vmatpush1.bf16.msra.mxu0 %v260
        %315 = vmatprep.subr.bf16.mxu0 %v263
        %316 = vmatpush1.bf16.msra.mxu0 %v262
        %317 = vmatprep.subr.bf16.mxu0 %v265
        %318 = vmatpush1.bf16.msra.mxu0 %v264
        %319 = vmatprep.subr.bf16.mxu0 %v267
        %320 = vmatpush1.bf16.msra.mxu0 %v266
        %321 = vmatprep.subr.bf16.mxu0 0
        %322 = vmatpush1.bf16.msra.mxu0 0
        %323 = vmatprep.subr.bf16.mxu0 0
        %324 = vmatpush1.bf16.msra.mxu0 0
        %325 = vmatprep.subr.bf16.mxu0 0
        %326 = vmatpush1.bf16.msra.mxu0 0
        %327 = vmatprep.subr.bf16.mxu0 0
        %328 = vmatpush1.bf16.msra.mxu0 0
        %329 = vmatprep.subr.bf16.mxu0 0
        %330 = vmatpush1.bf16.msra.mxu0 0
        %331 = vmatprep.subr.bf16.mxu0 0
        %332 = vmatpush1.bf16.msra.mxu0 0
        %333 = vmatprep.subr.bf16.mxu0 0
        %334 = vmatpush1.bf16.msra.mxu0 0
        %335 = vmatprep.subr.bf16.mxu0 0
        %336 = vmatpush1.bf16.msra.mxu0 0
        %337 = vmatprep.subr.bf16.mxu0 0
        %338 = vmatpush1.bf16.msra.mxu0 0
        %339 = vmatprep.subr.bf16.mxu0 0
        %340 = vmatpush1.bf16.msra.mxu0 0
        %341 = vmatprep.subr.bf16.mxu0 0
        %342 = vmatpush1.bf16.msra.mxu0 0
        %343 = vmatprep.subr.bf16.mxu0 0
        %344 = vmatpush1.bf16.msra.mxu0 0
        %345 = vmatprep.mubr.bf16.mxu0 0
        %346 = vmatmul.mubr.bf16.gmra.mrb[0].mxu0 %v308
        %v347 = vpop.f32.mrb[0].mxu0
        %v348 = vadd.f32 %v279, %v347
        %v349 = vpop.f32.mrb[0].mxu0
        %v350 = vadd.f32 %v279, %v349
        %v351 = vpop.f32.mrb[0].mxu0
        %v352 = vadd.f32 %v284, %v351
        %v353 = vpop.f32.mrb[0].mxu0
        %v354 = vadd.f32 %v284, %v353
        %355 = vmatprep.mubr.bf16.mxu0 0
        %356 = vmatmul.mubr.bf16.gmra.mrb[0].mxu0 %v311
        %v357 = vpop.f32.mrb[0].mxu0
        %v358 = vadd.f32 %v289, %v357
        %v359 = vpop.f32.mrb[0].mxu0
        %v360 = vadd.f32 %v289, %v359
        %v361 = vpop.f32.mrb[0].mxu0
        %v362 = vadd.f32 %v294, %v361
        %v363 = vpop.f32.mrb[0].mxu0
        %v364 = vadd.f32 %v294, %v363
        %365 = vdwg.mxu0
        %v366 = vmax.f32 %v348, %v350
        %367 = vmax.xlane.f32.xlu0 %v366
        %v368 = vpop.xlane.xlu0 %367
        %v369 = vmax.f32 %v352, %v354
        %370 = vmax.xlane.f32.xlu0 %v369
        %v371 = vpop.xlane.xlu0 %370
        %v372 = vmax.f32 %v358, %v360
        %373 = vmax.xlane.f32.xlu0 %v372
        %v374 = vpop.xlane.xlu0 %373
        %v375 = vmax.f32 %v362, %v364
        %376 = vmax.xlane.f32.xlu0 %v375
        %v377 = vpop.xlane.xlu0 %376
        %v378 = vsub.f32 %v348, %v368
        %v379 = vsub.f32 %v350, %v368
        %v380 = vsub.f32 %v352, %v371
        %v381 = vsub.f32 %v354, %v371
        %v382 = vsub.f32 %v358, %v374
        %v383 = vsub.f32 %v360, %v374
        %v384 = vsub.f32 %v362, %v377
        %v385 = vsub.f32 %v364, %v377
        %v386 = vmul.f32 %v378, 1.442695
        %v387 = vpow.pop %v386
        %v388 = vmul.f32 %v379, 1.442695
        %v389 = vpow.pop %v388
        %v390 = vmul.f32 %v380, 1.442695
        %v391 = vpow.pop %v390
        %v392 = vmul.f32 %v381, 1.442695
        %v393 = vpow.pop %v392
        %v394 = vmul.f32 %v382, 1.442695
        %v395 = vpow.pop %v394
        %v396 = vmul.f32 %v383, 1.442695
        %v397 = vpow.pop %v396
        %v398 = vmul.f32 %v384, 1.442695
        %v399 = vpow.pop %v398
        %v400 = vmul.f32 %v385, 1.442695
        %v401 = vpow.pop %v400
        %v402 = vadd.f32 %v387, %v389
        %403 = vadd.xlane.f32.xlu0 %v402
        %v404 = vpop.xlane.xlu0 %403
        %v405 = vadd.f32 %v391, %v393
        %406 = vadd.xlane.f32.xlu0 %v405
        %v407 = vpop.xlane.xlu0 %406
        %v408 = vadd.f32 %v395, %v397
        %409 = vadd.xlane.f32.xlu0 %v408
        %v410 = vpop.xlane.xlu0 %409
        %v411 = vadd.f32 %v399, %v401
        %412 = vadd.xlane.f32.xlu0 %v411
        %v413 = vpop.xlane.xlu0 %412
        %v414 = vrcp.pop %v404
        %v415 = vrcp.pop %v407
        %v416 = vrcp.pop %v410
        %v417 = vrcp.pop %v413
        %v418 = vmul.f32 %v387, %v414
        %v419 = vmul.f32 %v389, %v414
        %v420 = vmul.f32 %v391, %v415
        %v421 = vmul.f32 %v393, %v415
        %v422 = vmul.f32 %v395, %v416
        %v423 = vmul.f32 %v397, %v416
        %v424 = vmul.f32 %v399, %v417
        %v425 = vmul.f32 %v401, %v417
        %v426 = vadd.f32 %v418, %v420
        %v427 = vadd.f32 %v426, %v422
        %v428 = vadd.f32 %v427, %v424
        %v429 = vrot.slane %v428, 4
        %v430 = vadd.f32 %v428, %v429
        %v431 = vrot.slane %v430, 2
        %v432 = vadd.f32 %v430, %v431
        %v433 = vrot.slane %v432, 1
        %v434 = vadd.f32 %v432, %v433
        %v435 = vadd.f32 %v419, %v421
        %v436 = vadd.f32 %v435, %v423
        %v437 = vadd.f32 %v436, %v425
        %v438 = vrot.slane %v437, 4
        %v439 = vadd.f32 %v437, %v438
        %v440 = vrot.slane %v439, 2
        %v441 = vadd.f32 %v439, %v440
        %v442 = vrot.slane %v441, 1
        %v443 = vadd.f32 %v441, %v442
        %v444 = vadd.f32 %v434, 1e-09
        %v445 = vadd.f32 %v443, 1e-09
        %v446 = vrcp.pop %v444
        %v447 = vmul.f32 %v418, %v446
        %v448 = vrcp.pop %v445
        %v449 = vmul.f32 %v419, %v448
        %v450 = vmul.f32 %v420, %v446
        %v451 = vmul.f32 %v421, %v448
        %v452 = vmul.f32 %v422, %v446
        %v453 = vmul.f32 %v423, %v448
        %v454 = vmul.f32 %v424, %v446
        %v455 = vmul.f32 %v425, %v448
        %v456 = vld [vmem:[%s3] sm:$0xf]
        %v457 = vld [vmem:[%s3 + $0x4] sm:$0xf]
        %v458 = vld [vmem:[%s3 + $0x8] sm:$0xf]
        %v459 = vld [vmem:[%s3 + $0xc] sm:$0xf]
        %v460 = vld [vmem:[%s3 + $0x10] sm:$0xf]
        %v461 = vld [vmem:[%s3 + $0x14] sm:$0xf]
        %v462 = vld [vmem:[%s3 + $0x18] sm:$0xf]
        %v463 = vld [vmem:[%s3 + $0x1c] sm:$0xf]
        %v464 = vpack.c.bf16 %v450, %v447
        %v465 = vpack.c.bf16 %v451, %v449
        %v466 = vpack.c.bf16 %v454, %v452
        %v467 = vpack.c.bf16 %v455, %v453
        %v468 = vld [vmem:[%s4] sm:$0xff]
        %v469 = vld [vmem:[%s4 + $0x8] sm:$0xff]
        %v470 = vld [vmem:[%s4 + $0x10] sm:$0xff]
        %v471 = vld [vmem:[%s4 + $0x18] sm:$0xff]
        %v472 = vld [vmem:[%s4 + $0x20] sm:$0xff]
        %v473 = vld [vmem:[%s4 + $0x28] sm:$0xff]
        %v474 = vld [vmem:[%s4 + $0x30] sm:$0xff]
        %v475 = vld [vmem:[%s4 + $0x38] sm:$0xff]
        %477 = vset.pattern.permute.xlu0 0
        %478 = vperm.xlu0 %477, %v468
        %v479 = vpop.permute.xlu0 %478
        %482 = vset.pattern.permute.xlu0 0
        %483 = vperm.xlu0 %482, %v469
        %v484 = vpop.permute.xlu0 %483
        %487 = vset.pattern.permute.xlu0 0
        %488 = vperm.xlu0 %487, %v470
        %v489 = vpop.permute.xlu0 %488
        %492 = vset.pattern.permute.xlu0 0
        %493 = vperm.xlu0 %492, %v471
        %v494 = vpop.permute.xlu0 %493
        %497 = vset.pattern.permute.xlu0 0
        %498 = vperm.xlu0 %497, %v472
        %v499 = vpop.permute.xlu0 %498
        %502 = vset.pattern.permute.xlu0 0
        %503 = vperm.xlu0 %502, %v473
        %v504 = vpop.permute.xlu0 %503
        %507 = vset.pattern.permute.xlu0 0
        %508 = vperm.xlu0 %507, %v474
        %v509 = vpop.permute.xlu0 %508
        %512 = vset.pattern.permute.xlu0 0
        %513 = vperm.xlu0 %512, %v475
        %v514 = vpop.permute.xlu0 %513
        %v524 = vunpack.c.l.b16 %v456
        %v525 = vunpack.c.l.b16 %v457
        %v526 = vunpack.c.l.b16 %v458
        %v527 = vunpack.c.l.b16 %v459
        %v528 = vunpack.c.l.b16 %v460
        %v529 = vunpack.c.l.b16 %v461
        %v530 = vunpack.c.l.b16 %v462
        %v531 = vunpack.c.l.b16 %v463
        %v532 = vpack.c.b16 %v525, %v524
        %v533 = vpack.c.b16 %v527, %v526
        %v534 = vpack.c.b16 %v529, %v528
        %v535 = vpack.c.b16 %v531, %v530
        %vm536 = vcmask 261120
        %v538 = vsel %vm536, %v532, 0
        %v541 = vsel %vm536, %v533, 0
        %v544 = vsel %vm536, %v534, 0
        %v547 = vsel %vm536, %v535, 0
        %549 = vmatprep.subr.bf16.mxu0 %v465
        %550 = vmatpush1.bf16.msra.mxu0 %v464
        %551 = vmatprep.subr.bf16.mxu0 %v467
        %552 = vmatpush1.bf16.msra.mxu0 %v466
        %553 = vmatprep.subr.bf16.mxu0 0
        %554 = vmatpush1.bf16.msra.mxu0 0
        %555 = vmatprep.subr.bf16.mxu0 0
        %556 = vmatpush1.bf16.msra.mxu0 0
        %557 = vmatprep.subr.bf16.mxu0 0
        %558 = vmatpush1.bf16.msra.mxu0 0
        %559 = vmatprep.subr.bf16.mxu0 0
        %560 = vmatpush1.bf16.msra.mxu0 0
        %561 = vmatprep.subr.bf16.mxu0 0
        %562 = vmatpush1.bf16.msra.mxu0 0
        %563 = vmatprep.subr.bf16.mxu0 0
        %564 = vmatpush1.bf16.msra.mxu0 0
        %565 = vmatprep.subr.bf16.mxu0 0
        %566 = vmatpush1.bf16.msra.mxu0 0
        %567 = vmatprep.subr.bf16.mxu0 0
        %568 = vmatpush1.bf16.msra.mxu0 0
        %569 = vmatprep.subr.bf16.mxu0 0
        %570 = vmatpush1.bf16.msra.mxu0 0
        %571 = vmatprep.subr.bf16.mxu0 0
        %572 = vmatpush1.bf16.msra.mxu0 0
        %573 = vmatprep.subr.bf16.mxu0 0
        %574 = vmatpush1.bf16.msra.mxu0 0
        %575 = vmatprep.subr.bf16.mxu0 0
        %576 = vmatpush1.bf16.msra.mxu0 0
        %577 = vmatprep.subr.bf16.mxu0 0
        %578 = vmatpush1.bf16.msra.mxu0 0
        %579 = vmatprep.subr.bf16.mxu0 0
        %580 = vmatpush1.bf16.msra.mxu0 0
        %581 = vmatprep.mubr.bf16.mxu0 0
        %582 = vmatmul.mubr.bf16.gmra.mrb[0].mxu0 %v538
        %v583 = vpop.f32.mrb[0].mxu0
        %v584 = vadd.f32 %v479, %v583
        %v585 = vpop.f32.mrb[0].mxu0
        %v586 = vadd.f32 %v479, %v585
        %v587 = vpop.f32.mrb[0].mxu0
        %v588 = vadd.f32 %v484, %v587
        %v589 = vpop.f32.mrb[0].mxu0
        %v590 = vadd.f32 %v484, %v589
        %591 = vmatprep.mubr.bf16.mxu0 0
        %592 = vmatmul.mubr.bf16.gmra.mrb[0].mxu0 %v541
        %v593 = vpop.f32.mrb[0].mxu0
        %v594 = vadd.f32 %v489, %v593
        %v595 = vpop.f32.mrb[0].mxu0
        %v596 = vadd.f32 %v489, %v595
        %v597 = vpop.f32.mrb[0].mxu0
        %v598 = vadd.f32 %v494, %v597
        %v599 = vpop.f32.mrb[0].mxu0
        %v600 = vadd.f32 %v494, %v599
        %601 = vmatprep.mubr.bf16.mxu0 0
        %602 = vmatmul.mubr.bf16.gmra.mrb[0].mxu0 %v544
        %v603 = vpop.f32.mrb[0].mxu0
        %v604 = vadd.f32 %v499, %v603
        %v605 = vpop.f32.mrb[0].mxu0
        %v606 = vadd.f32 %v499, %v605
        %v607 = vpop.f32.mrb[0].mxu0
        %v608 = vadd.f32 %v504, %v607
        %v609 = vpop.f32.mrb[0].mxu0
        %v610 = vadd.f32 %v504, %v609
        %611 = vmatprep.mubr.bf16.mxu0 0
        %612 = vmatmul.mubr.bf16.gmra.mrb[0].mxu0 %v547
        %v613 = vpop.f32.mrb[0].mxu0
        %v614 = vadd.f32 %v509, %v613
        %v615 = vpop.f32.mrb[0].mxu0
        %v616 = vadd.f32 %v509, %v615
        %v617 = vpop.f32.mrb[0].mxu0
        %v618 = vadd.f32 %v514, %v617
        %v619 = vpop.f32.mrb[0].mxu0
        %v620 = vadd.f32 %v514, %v619
        %621 = vdwg.mxu0
        %622 = vst [vmem:[%s242] sm:$0xff] %v584
        %623 = vst [vmem:[%s242 + $0x8] sm:$0xff] %v586
        %624 = vst [vmem:[%s242 + $0x10] sm:$0xff] %v588
        %625 = vst [vmem:[%s242 + $0x18] sm:$0xff] %v590
        %626 = vst [vmem:[%s242 + $0x20] sm:$0xff] %v594
        %627 = vst [vmem:[%s242 + $0x28] sm:$0xff] %v596
        %628 = vst [vmem:[%s242 + $0x30] sm:$0xff] %v598
        %629 = vst [vmem:[%s242 + $0x38] sm:$0xff] %v600
        %630 = vst [vmem:[%s242 + $0x40] sm:$0xff] %v604
        %631 = vst [vmem:[%s242 + $0x48] sm:$0xff] %v606
        %632 = vst [vmem:[%s242 + $0x50] sm:$0xff] %v608
        %633 = vst [vmem:[%s242 + $0x58] sm:$0xff] %v610
        %634 = vst [vmem:[%s242 + $0x60] sm:$0xff] %v614
        %635 = vst [vmem:[%s242 + $0x68] sm:$0xff] %v616
        %636 = vst [vmem:[%s242 + $0x70] sm:$0xff] %v618
        %637 = vst [vmem:[%s242 + $0x78] sm:$0xff] %v620
        %s638 = sand.u32 %s140, 1
        %s639 = scalar_lea.sflag [#allocation4], %s638
        %s640 = sand.u32 %s140, 1
        %s641 = smul.addr %s640, 128
        %s642 = scalar_lea.vmem [#allocation5], %s641
        // Predicated region
        $region45: #{tpu_custom_call.1} parent=39 // pred_check
          %p643 = pneg %p150
        $region46: #{tpu_custom_call.1} parent=39 // pred_check_branch
          %645 = sbr.rel (%p643) target = $region48
        $region47: #{tpu_custom_call.1} parent=39 // pred_region
          %s647 = ssub.s32 2048, 2048
          %648 = vsyncadd %s639, %s647
          %s649 = smul.addr %s22, 16
          %s650 = smul.addr %s649, 128
          %s651 = scalar_lea.hbm %s5, %s650
          %s652 = sshll.u32 %s642, 4
          %s653 = int_to_ptr.vmem [resolvable:$true] %s652
          %658 = dma.vmem_to_hbm [thread:$0]  %s653, 2048, %s651, %s639, 256, 256, 16
        $region48: #{tpu_custom_call.1} parent=39 // pred_fallthru
          _
      $region40: #{tpu_custom_call.1} parent=5 // pred_fallthru
        _
      %p659 = scmp.le.s32.totalorder 2, %s17
      // Predicated region
      $region49: #{tpu_custom_call.1} parent=5 // pred_check
        %p660 = pneg %p659
      $region50: #{tpu_custom_call.1} parent=5 // pred_check_branch
        %662 = sbr.rel (%p660) target = $region52
      $region51: #{tpu_custom_call.1} parent=5 // pred_region
        %s663 = ssub.s32 %s17, 2
        // Predicated region
        $region53: #{tpu_custom_call.1} parent=51 // pred_check
          %p664 = pneg %p156
        $region54: #{tpu_custom_call.1} parent=51 // pred_check_branch
          %666 = sbr.rel (%p664) target = $region56
        $region55: #{tpu_custom_call.1} parent=51 // pred_region
          %s667 = sand.u32 %s141, 1
          %s668 = scalar_lea.sflag [#allocation4], %s667
          %s669 = sand.u32 %s141, 1
          %s670 = smul.addr %s669, 128
          %s671 = scalar_lea.vmem [#allocation5], %s670
          %672 = dma.done %s668, 2048
        $region56: #{tpu_custom_call.1} parent=51 // pred_fallthru
          _
      $region52: #{tpu_custom_call.1} parent=5 // pred_fallthru
        _
    $region6: #{tpu_custom_call.1} parent=1 // loop_footer
      %s21 = sadd.s32 1, %s17
    $region7: #{tpu_custom_call.1} parent=1 // loop_footer_branch
      %16 = sbr.rel target = $region3
    $region8: #{tpu_custom_call.1} parent=1 // loop_exit
      _
    %673 = vsyncpa [#allocation3], 1
    %s674 = scalar_lea.sflag [#allocation3], 1
    %675 = vsyncpa %s674, 1
    %676 = vsyncpa [#allocation4], 1
    %s677 = scalar_lea.sflag [#allocation4], 1
    %678 = vsyncpa %s677, 1

</llo_original>
